<compile_context>
chip_gen: v5e
topology: v5e:2x2
jax: 0.10.0
libtpu: 0.0.40
codegen_flags: <defaults>
</compile_context>

<pallas_src>
import jax
import jax.numpy as jnp
from jax.experimental import pallas as pl
from jax.experimental.pallas import tpu as pltpu

BATCH_TILE = 128   # batch rows per grid step (clamped to B for small batches)
OUT_LANES = 128    # lane-dense output width


def _resident_spec(shape):
    # Full-array block whose index never changes -> stays VMEM-resident.
    return pl.BlockSpec(shape, lambda i, _n=len(shape): (0,) * _n)


def _make_kernel(bt, ty, tz):
    inv_ty = 1.0 / ty
    inv_tz = 1.0 / tz

    def kernel(
        x_ref, yf_ref, zf_ref,
        w1_ref, b1_ref, w2_ref, b2_ref,
        wy1_ref, by1_ref, wy2_ref, by2_ref,
        wz1_ref, bz1_ref, wz2_ref, bz2_ref,
        wf1x_ref, wf1y_ref, wf1z_ref, bf1_ref,
        wf2r_ref, bf2_ref,
        out_ref,
    ):
        f32 = jnp.float32
        bf16 = jnp.bfloat16

        def mm(a, w_ref):
            # bf16 MXU matmul with f32 accumulation.
            return jnp.dot(a.astype(bf16), w_ref[...], preferred_element_type=f32)

        # --- "cnn" branch: Linear -> ReLU -> Linear -----------------------
        h = jnp.maximum(mm(x_ref[...], w1_ref) + b1_ref[...], 0.0)
        xh = mm(h, w2_ref) + b2_ref[...]                       # (bt, L) f32

        # --- "lstm1" branch (per-timestep MLP) -> mean over T -------------
        hy = jnp.maximum(mm(yf_ref[...], wy1_ref) + by1_ref[...], 0.0)
        hy = jnp.maximum(mm(hy, wy2_ref) + by2_ref[...], 0.0)  # (bt*ty, H1) f32
        h1 = hy.shape[-1]
        ym = jnp.sum(hy.reshape(bt, ty, h1), axis=1) * inv_ty  # (bt, H1)

        # --- "lstm2" branch ------------------------------------------------
        hz = jnp.maximum(mm(zf_ref[...], wz1_ref) + bz1_ref[...], 0.0)
        hz = jnp.maximum(mm(hz, wz2_ref) + bz2_ref[...], 0.0)  # (bt*tz, H2) f32
        h2 = hz.shape[-1]
        zm = jnp.sum(hz.reshape(bt, tz, h2), axis=1) * inv_tz  # (bt, H2)

        # --- F.normalize(v) == v / max(||v||, 1e-12)  (eps on squared norm) -
        def l2norm(v):
            n2 = jnp.sum(v * v, axis=1, keepdims=True)
            return v * jax.lax.rsqrt(jnp.maximum(n2, 1e-24))

        # fc starts with ReLU(concat); ReLU commutes with the block split.
        xr = jnp.maximum(l2norm(xh), 0.0)
        yr = jnp.maximum(l2norm(ym), 0.0)
        zr = jnp.maximum(l2norm(zm), 0.0)

        # --- fc: Linear (concat folded into 3 weight blocks) -> ReLU -> Linear
        f = (mm(xr, wf1x_ref) + mm(yr, wf1y_ref) + mm(zr, wf1z_ref)
             + bf1_ref[...])
        f = jnp.maximum(f, 0.0)                                # (bt, L) f32

        # Final N=1 projection on the VPU/XLU (no MXU fill/drain).
        logit = jnp.sum(f * wf2r_ref[...], axis=1, keepdims=True) + bf2_ref[...]
        sig = jax.nn.sigmoid(logit)                            # (bt, 1) f32

        # Lane-dense store: broadcast across 128 lanes -> unmasked vst.
        out_ref[...] = jnp.broadcast_to(sig, (bt, OUT_LANES))

    return kernel


def make_params(key, dx, dy, dz, linear_dim, h1, h2):
    ks = jax.random.split(key, 12)
    s = 0.1

    def w(k, shape):
        return jax.random.normal(k, shape, jnp.float32) * s

    params = {
        # cnn
        "w1": w(ks[0], (dx, linear_dim)), "b1": w(ks[1], (1, linear_dim)),
        "w2": w(ks[2], (linear_dim, linear_dim)), "b2": w(ks[3], (1, linear_dim)),
        # lstm1 (MLP)
        "wy1": w(ks[4], (dy, h1)), "by1": w(ks[5], (1, h1)),
        "wy2": w(ks[6], (h1, h1)), "by2": w(ks[7], (1, h1)),
        # lstm2 (MLP)
        "wz1": w(ks[8], (dz, h2)), "bz1": w(ks[9], (1, h2)),
        "wz2": w(ks[10], (h2, h2)), "bz2": w(ks[11], (1, h2)),
    }
    kf = jax.random.split(jax.random.fold_in(key, 123), 4)
    params["wf1x"] = w(kf[0], (linear_dim, linear_dim))
    params["wf1y"] = w(kf[1], (h1, linear_dim))
    params["wf1z"] = w(kf[2], (h2, linear_dim))
    params["bf1"] = w(kf[3], (1, linear_dim))
    kf2 = jax.random.split(jax.random.fold_in(key, 456), 2)
    params["wf2"] = w(kf2[0], (linear_dim, 1))
    params["bf2"] = w(kf2[1], (1, 1))
    return params


@jax.jit
def hybrid_forward(x, y, y_h, z, z_h, params):
    B, Ty, Dy = y.shape
    _, Tz, Dz = z.shape
    Dx = x.shape[1]

    bt = min(B, BATCH_TILE)
    grid = (pl.cdiv(B, bt),)

    bf16 = jnp.bfloat16
    f32 = jnp.float32

    # Flatten seq dims (contiguous, free) and cast matmul operands to bf16.
    xb = x.astype(bf16)
    yf = y.reshape(B * Ty, Dy).astype(bf16)
    zf = z.reshape(B * Tz, Dz).astype(bf16)

    def wc(name):
        return params[name].astype(bf16)

    wf2r = params["wf2"].reshape(1, -1).astype(f32)   # (1, L) row for VPU dot

    inputs = [
        xb, yf, zf,
        wc("w1"), params["b1"], wc("w2"), params["b2"],
        wc("wy1"), params["by1"], wc("wy2"), params["by2"],
        wc("wz1"), params["bz1"], wc("wz2"), params["bz2"],
        wc("wf1x"), wc("wf1y"), wc("wf1z"), params["bf1"],
        wf2r, params["bf2"],
    ]

    in_specs = [
        pl.BlockSpec((bt, Dx), lambda i: (i, 0)),
        pl.BlockSpec((bt * Ty, Dy), lambda i: (i, 0)),
        pl.BlockSpec((bt * Tz, Dz), lambda i: (i, 0)),
    ] + [_resident_spec(a.shape) for a in inputs[3:]]

    out = pl.pallas_call(
        _make_kernel(bt, Ty, Tz),
        out_shape=jax.ShapeDtypeStruct((B, OUT_LANES), f32),
        grid=grid,
        in_specs=in_specs,
        out_specs=pl.BlockSpec((bt, OUT_LANES), lambda i: (i, 0)),
        compiler_params=pltpu.CompilerParams(
            dimension_semantics=("parallel",)),
    )(*inputs)

    c = out[:, 0]          # == .view(-1)
    return c, y_h, z_h     # hidden states pass through untouched


def reference_forward(x, y, z, params):
    """Pure-JAX f32 reference of the PyTorch forward."""
    relu = jax.nn.relu
    xh = relu(x @ params["w1"] + params["b1"]) @ params["w2"] + params["b2"]
    hy = relu(relu(y @ params["wy1"] + params["by1"]) @ params["wy2"] + params["by2"])
    hz = relu(relu(z @ params["wz1"] + params["bz1"]) @ params["wz2"] + params["bz2"])
    ym = hy.mean(axis=1)
    zm = hz.mean(axis=1)

    def nrm(v):
        n = jnp.sqrt(jnp.sum(v * v, axis=1, keepdims=True))
        return v / jnp.maximum(n, 1e-12)

    c = relu(jnp.concatenate([nrm(xh), nrm(ym), nrm(zm)], axis=1))
    wf1 = jnp.concatenate([params["wf1x"], params["wf1y"], params["wf1z"]], axis=0)
    f = relu(c @ wf1 + params["bf1"])
    logit = f @ params["wf2"] + params["bf2"]
    return jax.nn.sigmoid(logit).reshape(-1)


if __name__ == "__main__":
    # Small shapes consistent with the forward pass.
    B, T = 4, 8
    Dx, Dy, Dz = 16, 12, 10
    LINEAR, H1, H2 = 64, 32, 32
    NUM_LAYERS = 2

    key = jax.random.PRNGKey(0)
    kx, ky, kz, kp = jax.random.split(key, 4)

    x = jax.random.normal(kx, (B, Dx), jnp.float32)
    y = jax.random.normal(ky, (B, T, Dy), jnp.float32)
    z = jax.random.normal(kz, (B, T, Dz), jnp.float32)

    # init_hidden equivalents (passed through unchanged by forward)
    y_h = (jnp.zeros((NUM_LAYERS, B, H1), jnp.float32),
           jnp.zeros((NUM_LAYERS, B, H1), jnp.float32))
    z_h = (jnp.zeros((NUM_LAYERS, B, H2), jnp.float32),
           jnp.zeros((NUM_LAYERS, B, H2), jnp.float32))

    params = make_params(kp, Dx, Dy, Dz, LINEAR, H1, H2)

    c, y_h_out, z_h_out = hybrid_forward(x, y, y_h, z, z_h, params)
    jax.block_until_ready(c)

    assert c.shape == (B,)
    assert bool(jnp.all((c >= 0.0) & (c <= 1.0)))

    # Numerical check vs f32 reference (kernel matmuls run in bf16).
    c_ref = reference_forward(x, y, z, params)
    err = float(jnp.max(jnp.abs(c - c_ref)))
    assert err < 5e-2, f"max abs error {err}"

    print("KERNEL_OK")
</pallas_src>

<mosaic_0001>
module attributes {stable_mosaic.version = 11 : i64} {
  func.func @kernel(%arg0: i32, %arg1: memref<4x16xbf16, #tpu.memory_space<vmem>>, %arg2: memref<32x12xbf16, #tpu.memory_space<vmem>>, %arg3: memref<32x10xbf16, #tpu.memory_space<vmem>>, %arg4: memref<16x64xbf16, #tpu.memory_space<vmem>>, %arg5: memref<1x64xf32, #tpu.memory_space<vmem>>, %arg6: memref<64x64xbf16, #tpu.memory_space<vmem>>, %arg7: memref<1x64xf32, #tpu.memory_space<vmem>>, %arg8: memref<12x32xbf16, #tpu.memory_space<vmem>>, %arg9: memref<1x32xf32, #tpu.memory_space<vmem>>, %arg10: memref<32x32xbf16, #tpu.memory_space<vmem>>, %arg11: memref<1x32xf32, #tpu.memory_space<vmem>>, %arg12: memref<10x32xbf16, #tpu.memory_space<vmem>>, %arg13: memref<1x32xf32, #tpu.memory_space<vmem>>, %arg14: memref<32x32xbf16, #tpu.memory_space<vmem>>, %arg15: memref<1x32xf32, #tpu.memory_space<vmem>>, %arg16: memref<64x64xbf16, #tpu.memory_space<vmem>>, %arg17: memref<32x64xbf16, #tpu.memory_space<vmem>>, %arg18: memref<32x64xbf16, #tpu.memory_space<vmem>>, %arg19: memref<1x64xf32, #tpu.memory_space<vmem>>, %arg20: memref<1x64xf32, #tpu.memory_space<vmem>>, %arg21: memref<1x1xf32, #tpu.memory_space<vmem>>, %arg22: memref<4x128xf32, #tpu.memory_space<vmem>>) attributes {dimension_semantics = [#tpu.dimension_semantics<parallel>], iteration_bounds = array<i64: 1>, scalar_prefetch = 0 : i64, scratch_operands = 0 : i64, tpu.core_type = #tpu.core_type<tc>, window_params = [{transform_indices = @transform_0, window_bounds = array<i64: 4, 16>}, {transform_indices = @transform_1, window_bounds = array<i64: 32, 12>}, {transform_indices = @transform_2, window_bounds = array<i64: 32, 10>}, {pipeline_mode = #tpu.pipeline_mode<synchronous>, transform_indices = @transform_3, window_bounds = array<i64: 16, 64>}, {pipeline_mode = #tpu.pipeline_mode<synchronous>, transform_indices = @transform_4, window_bounds = array<i64: 1, 64>}, {pipeline_mode = #tpu.pipeline_mode<synchronous>, transform_indices = @transform_5, window_bounds = array<i64: 64, 64>}, {pipeline_mode = #tpu.pipeline_mode<synchronous>, transform_indices = @transform_6, window_bounds = array<i64: 1, 64>}, {pipeline_mode = #tpu.pipeline_mode<synchronous>, transform_indices = @transform_7, window_bounds = array<i64: 12, 32>}, {pipeline_mode = #tpu.pipeline_mode<synchronous>, transform_indices = @transform_8, window_bounds = array<i64: 1, 32>}, {pipeline_mode = #tpu.pipeline_mode<synchronous>, transform_indices = @transform_9, window_bounds = array<i64: 32, 32>}, {pipeline_mode = #tpu.pipeline_mode<synchronous>, transform_indices = @transform_10, window_bounds = array<i64: 1, 32>}, {pipeline_mode = #tpu.pipeline_mode<synchronous>, transform_indices = @transform_11, window_bounds = array<i64: 10, 32>}, {pipeline_mode = #tpu.pipeline_mode<synchronous>, transform_indices = @transform_12, window_bounds = array<i64: 1, 32>}, {pipeline_mode = #tpu.pipeline_mode<synchronous>, transform_indices = @transform_13, window_bounds = array<i64: 32, 32>}, {pipeline_mode = #tpu.pipeline_mode<synchronous>, transform_indices = @transform_14, window_bounds = array<i64: 1, 32>}, {pipeline_mode = #tpu.pipeline_mode<synchronous>, transform_indices = @transform_15, window_bounds = array<i64: 64, 64>}, {pipeline_mode = #tpu.pipeline_mode<synchronous>, transform_indices = @transform_16, window_bounds = array<i64: 32, 64>}, {pipeline_mode = #tpu.pipeline_mode<synchronous>, transform_indices = @transform_17, window_bounds = array<i64: 32, 64>}, {pipeline_mode = #tpu.pipeline_mode<synchronous>, transform_indices = @transform_18, window_bounds = array<i64: 1, 64>}, {pipeline_mode = #tpu.pipeline_mode<synchronous>, transform_indices = @transform_19, window_bounds = array<i64: 1, 64>}, {pipeline_mode = #tpu.pipeline_mode<synchronous>, transform_indices = @transform_20, window_bounds = array<i64: 1, 1>}, {transform_indices = @transform_21, window_bounds = array<i64: 4, 128>}]} {
    %c0 = arith.constant 0 : index
    %c0_0 = arith.constant 0 : index
    %0 = vector.load %arg1[%c0, %c0_0] : memref<4x16xbf16, #tpu.memory_space<vmem>>, vector<4x16xbf16>
    %c0_1 = arith.constant 0 : index
    %c0_2 = arith.constant 0 : index
    %1 = vector.load %arg4[%c0_1, %c0_2] : memref<16x64xbf16, #tpu.memory_space<vmem>>, vector<16x64xbf16>
    %cst = arith.constant dense<0.000000e+00> : vector<4x64xf32>
    %2 = tpu.matmul %0, %1, %cst {dimension_numbers = #tpu.dot_dimension_numbers<[1], [0], [0], [1], [0, 0, 1, 1], [], []>} : vector<4x16xbf16>, vector<16x64xbf16>, vector<4x64xf32> -> vector<4x64xf32>
    %c0_3 = arith.constant 0 : index
    %c0_4 = arith.constant 0 : index
    %3 = vector.load %arg5[%c0_3, %c0_4] : memref<1x64xf32, #tpu.memory_space<vmem>>, vector<1x64xf32>
    %4 = vector.broadcast %3 : vector<1x64xf32> to vector<4x64xf32>
    %5 = arith.addf %2, %4 : vector<4x64xf32>
    %cst_5 = arith.constant 0.000000e+00 : f32
    %6 = vector.broadcast %cst_5 : f32 to vector<4x64xf32>
    %7 = arith.maximumf %5, %6 : vector<4x64xf32>
    %8 = arith.truncf %7 : vector<4x64xf32> to vector<4x64xbf16>
    %c0_6 = arith.constant 0 : index
    %c0_7 = arith.constant 0 : index
    %9 = vector.load %arg6[%c0_6, %c0_7] : memref<64x64xbf16, #tpu.memory_space<vmem>>, vector<64x64xbf16>
    %cst_8 = arith.constant dense<0.000000e+00> : vector<4x64xf32>
    %10 = tpu.matmul %8, %9, %cst_8 {dimension_numbers = #tpu.dot_dimension_numbers<[1], [0], [0], [1], [0, 0, 1, 1], [], []>} : vector<4x64xbf16>, vector<64x64xbf16>, vector<4x64xf32> -> vector<4x64xf32>
    %c0_9 = arith.constant 0 : index
    %c0_10 = arith.constant 0 : index
    %11 = vector.load %arg7[%c0_9, %c0_10] : memref<1x64xf32, #tpu.memory_space<vmem>>, vector<1x64xf32>
    %12 = vector.broadcast %11 : vector<1x64xf32> to vector<4x64xf32>
    %13 = arith.addf %10, %12 : vector<4x64xf32>
    %c0_11 = arith.constant 0 : index
    %c0_12 = arith.constant 0 : index
    %14 = vector.load %arg2[%c0_11, %c0_12] : memref<32x12xbf16, #tpu.memory_space<vmem>>, vector<32x12xbf16>
    %c0_13 = arith.constant 0 : index
    %c0_14 = arith.constant 0 : index
    %15 = vector.load %arg8[%c0_13, %c0_14] : memref<12x32xbf16, #tpu.memory_space<vmem>>, vector<12x32xbf16>
    %cst_15 = arith.constant dense<0.000000e+00> : vector<32x32xf32>
    %16 = tpu.matmul %14, %15, %cst_15 {dimension_numbers = #tpu.dot_dimension_numbers<[1], [0], [0], [1], [0, 0, 1, 1], [], []>} : vector<32x12xbf16>, vector<12x32xbf16>, vector<32x32xf32> -> vector<32x32xf32>
    %c0_16 = arith.constant 0 : index
    %c0_17 = arith.constant 0 : index
    %17 = vector.load %arg9[%c0_16, %c0_17] : memref<1x32xf32, #tpu.memory_space<vmem>>, vector<1x32xf32>
    %18 = vector.broadcast %17 : vector<1x32xf32> to vector<32x32xf32>
    %19 = arith.addf %16, %18 : vector<32x32xf32>
    %cst_18 = arith.constant 0.000000e+00 : f32
    %20 = vector.broadcast %cst_18 : f32 to vector<32x32xf32>
    %21 = arith.maximumf %19, %20 : vector<32x32xf32>
    %22 = arith.truncf %21 : vector<32x32xf32> to vector<32x32xbf16>
    %c0_19 = arith.constant 0 : index
    %c0_20 = arith.constant 0 : index
    %23 = vector.load %arg10[%c0_19, %c0_20] : memref<32x32xbf16, #tpu.memory_space<vmem>>, vector<32x32xbf16>
    %cst_21 = arith.constant dense<0.000000e+00> : vector<32x32xf32>
    %24 = tpu.matmul %22, %23, %cst_21 {dimension_numbers = #tpu.dot_dimension_numbers<[1], [0], [0], [1], [0, 0, 1, 1], [], []>} : vector<32x32xbf16>, vector<32x32xbf16>, vector<32x32xf32> -> vector<32x32xf32>
    %c0_22 = arith.constant 0 : index
    %c0_23 = arith.constant 0 : index
    %25 = vector.load %arg11[%c0_22, %c0_23] : memref<1x32xf32, #tpu.memory_space<vmem>>, vector<1x32xf32>
    %26 = vector.broadcast %25 : vector<1x32xf32> to vector<32x32xf32>
    %27 = arith.addf %24, %26 : vector<32x32xf32>
    %cst_24 = arith.constant 0.000000e+00 : f32
    %28 = vector.broadcast %cst_24 : f32 to vector<32x32xf32>
    %29 = arith.maximumf %27, %28 : vector<32x32xf32>
    %30 = vector.shape_cast %29 : vector<32x32xf32> to vector<4x8x32xf32>
    %cst_25 = arith.constant dense<0.000000e+00> : vector<4x32xf32>
    %31 = vector.multi_reduction <add>, %30, %cst_25 [1] : vector<4x8x32xf32> to vector<4x32xf32>
    %cst_26 = arith.constant 1.250000e-01 : f32
    %32 = vector.broadcast %cst_26 : f32 to vector<4x32xf32>
    %33 = arith.mulf %31, %32 : vector<4x32xf32>
    %c0_27 = arith.constant 0 : index
    %c0_28 = arith.constant 0 : index
    %34 = vector.load %arg3[%c0_27, %c0_28] : memref<32x10xbf16, #tpu.memory_space<vmem>>, vector<32x10xbf16>
    %c0_29 = arith.constant 0 : index
    %c0_30 = arith.constant 0 : index
    %35 = vector.load %arg12[%c0_29, %c0_30] : memref<10x32xbf16, #tpu.memory_space<vmem>>, vector<10x32xbf16>
    %cst_31 = arith.constant dense<0.000000e+00> : vector<32x32xf32>
    %36 = tpu.matmul %34, %35, %cst_31 {dimension_numbers = #tpu.dot_dimension_numbers<[1], [0], [0], [1], [0, 0, 1, 1], [], []>} : vector<32x10xbf16>, vector<10x32xbf16>, vector<32x32xf32> -> vector<32x32xf32>
    %c0_32 = arith.constant 0 : index
    %c0_33 = arith.constant 0 : index
    %37 = vector.load %arg13[%c0_32, %c0_33] : memref<1x32xf32, #tpu.memory_space<vmem>>, vector<1x32xf32>
    %38 = vector.broadcast %37 : vector<1x32xf32> to vector<32x32xf32>
    %39 = arith.addf %36, %38 : vector<32x32xf32>
    %cst_34 = arith.constant 0.000000e+00 : f32
    %40 = vector.broadcast %cst_34 : f32 to vector<32x32xf32>
    %41 = arith.maximumf %39, %40 : vector<32x32xf32>
    %42 = arith.truncf %41 : vector<32x32xf32> to vector<32x32xbf16>
    %c0_35 = arith.constant 0 : index
    %c0_36 = arith.constant 0 : index
    %43 = vector.load %arg14[%c0_35, %c0_36] : memref<32x32xbf16, #tpu.memory_space<vmem>>, vector<32x32xbf16>
    %cst_37 = arith.constant dense<0.000000e+00> : vector<32x32xf32>
    %44 = tpu.matmul %42, %43, %cst_37 {dimension_numbers = #tpu.dot_dimension_numbers<[1], [0], [0], [1], [0, 0, 1, 1], [], []>} : vector<32x32xbf16>, vector<32x32xbf16>, vector<32x32xf32> -> vector<32x32xf32>
    %c0_38 = arith.constant 0 : index
    %c0_39 = arith.constant 0 : index
    %45 = vector.load %arg15[%c0_38, %c0_39] : memref<1x32xf32, #tpu.memory_space<vmem>>, vector<1x32xf32>
    %46 = vector.broadcast %45 : vector<1x32xf32> to vector<32x32xf32>
    %47 = arith.addf %44, %46 : vector<32x32xf32>
    %cst_40 = arith.constant 0.000000e+00 : f32
    %48 = vector.broadcast %cst_40 : f32 to vector<32x32xf32>
    %49 = arith.maximumf %47, %48 : vector<32x32xf32>
    %50 = vector.shape_cast %49 : vector<32x32xf32> to vector<4x8x32xf32>
    %cst_41 = arith.constant dense<0.000000e+00> : vector<4x32xf32>
    %51 = vector.multi_reduction <add>, %50, %cst_41 [1] : vector<4x8x32xf32> to vector<4x32xf32>
    %cst_42 = arith.constant 1.250000e-01 : f32
    %52 = vector.broadcast %cst_42 : f32 to vector<4x32xf32>
    %53 = arith.mulf %51, %52 : vector<4x32xf32>
    %54 = arith.mulf %13, %13 : vector<4x64xf32>
    %cst_43 = arith.constant dense<0.000000e+00> : vector<4xf32>
    %55 = vector.multi_reduction <add>, %54, %cst_43 [1] : vector<4x64xf32> to vector<4xf32>
    %56 = vector.shape_cast %55 : vector<4xf32> to vector<4x1xf32>
    %cst_44 = arith.constant 1.000000e-24 : f32
    %57 = vector.broadcast %cst_44 : f32 to vector<4x1xf32>
    %58 = arith.maximumf %56, %57 : vector<4x1xf32>
    %59 = math.rsqrt %58 : vector<4x1xf32>
    %60 = vector.broadcast %59 : vector<4x1xf32> to vector<4x64xf32>
    %61 = arith.mulf %13, %60 : vector<4x64xf32>
    %cst_45 = arith.constant 0.000000e+00 : f32
    %62 = vector.broadcast %cst_45 : f32 to vector<4x64xf32>
    %63 = arith.maximumf %61, %62 : vector<4x64xf32>
    %64 = arith.mulf %33, %33 : vector<4x32xf32>
    %cst_46 = arith.constant dense<0.000000e+00> : vector<4xf32>
    %65 = vector.multi_reduction <add>, %64, %cst_46 [1] : vector<4x32xf32> to vector<4xf32>
    %66 = vector.shape_cast %65 : vector<4xf32> to vector<4x1xf32>
    %cst_47 = arith.constant 1.000000e-24 : f32
    %67 = vector.broadcast %cst_47 : f32 to vector<4x1xf32>
    %68 = arith.maximumf %66, %67 : vector<4x1xf32>
    %69 = math.rsqrt %68 : vector<4x1xf32>
    %70 = vector.broadcast %69 : vector<4x1xf32> to vector<4x32xf32>
    %71 = arith.mulf %33, %70 : vector<4x32xf32>
    %cst_48 = arith.constant 0.000000e+00 : f32
    %72 = vector.broadcast %cst_48 : f32 to vector<4x32xf32>
    %73 = arith.maximumf %71, %72 : vector<4x32xf32>
    %74 = arith.mulf %53, %53 : vector<4x32xf32>
    %cst_49 = arith.constant dense<0.000000e+00> : vector<4xf32>
    %75 = vector.multi_reduction <add>, %74, %cst_49 [1] : vector<4x32xf32> to vector<4xf32>
    %76 = vector.shape_cast %75 : vector<4xf32> to vector<4x1xf32>
    %cst_50 = arith.constant 1.000000e-24 : f32
    %77 = vector.broadcast %cst_50 : f32 to vector<4x1xf32>
    %78 = arith.maximumf %76, %77 : vector<4x1xf32>
    %79 = math.rsqrt %78 : vector<4x1xf32>
    %80 = vector.broadcast %79 : vector<4x1xf32> to vector<4x32xf32>
    %81 = arith.mulf %53, %80 : vector<4x32xf32>
    %cst_51 = arith.constant 0.000000e+00 : f32
    %82 = vector.broadcast %cst_51 : f32 to vector<4x32xf32>
    %83 = arith.maximumf %81, %82 : vector<4x32xf32>
    %84 = arith.truncf %63 : vector<4x64xf32> to vector<4x64xbf16>
    %c0_52 = arith.constant 0 : index
    %c0_53 = arith.constant 0 : index
    %85 = vector.load %arg16[%c0_52, %c0_53] : memref<64x64xbf16, #tpu.memory_space<vmem>>, vector<64x64xbf16>
    %cst_54 = arith.constant dense<0.000000e+00> : vector<4x64xf32>
    %86 = tpu.matmul %84, %85, %cst_54 {dimension_numbers = #tpu.dot_dimension_numbers<[1], [0], [0], [1], [0, 0, 1, 1], [], []>} : vector<4x64xbf16>, vector<64x64xbf16>, vector<4x64xf32> -> vector<4x64xf32>
    %87 = arith.truncf %73 : vector<4x32xf32> to vector<4x32xbf16>
    %c0_55 = arith.constant 0 : index
    %c0_56 = arith.constant 0 : index
    %88 = vector.load %arg17[%c0_55, %c0_56] : memref<32x64xbf16, #tpu.memory_space<vmem>>, vector<32x64xbf16>
    %cst_57 = arith.constant dense<0.000000e+00> : vector<4x64xf32>
    %89 = tpu.matmul %87, %88, %cst_57 {dimension_numbers = #tpu.dot_dimension_numbers<[1], [0], [0], [1], [0, 0, 1, 1], [], []>} : vector<4x32xbf16>, vector<32x64xbf16>, vector<4x64xf32> -> vector<4x64xf32>
    %90 = arith.addf %86, %89 : vector<4x64xf32>
    %91 = arith.truncf %83 : vector<4x32xf32> to vector<4x32xbf16>
    %c0_58 = arith.constant 0 : index
    %c0_59 = arith.constant 0 : index
    %92 = vector.load %arg18[%c0_58, %c0_59] : memref<32x64xbf16, #tpu.memory_space<vmem>>, vector<32x64xbf16>
    %cst_60 = arith.constant dense<0.000000e+00> : vector<4x64xf32>
    %93 = tpu.matmul %91, %92, %cst_60 {dimension_numbers = #tpu.dot_dimension_numbers<[1], [0], [0], [1], [0, 0, 1, 1], [], []>} : vector<4x32xbf16>, vector<32x64xbf16>, vector<4x64xf32> -> vector<4x64xf32>
    %94 = arith.addf %90, %93 : vector<4x64xf32>
    %c0_61 = arith.constant 0 : index
    %c0_62 = arith.constant 0 : index
    %95 = vector.load %arg19[%c0_61, %c0_62] : memref<1x64xf32, #tpu.memory_space<vmem>>, vector<1x64xf32>
    %96 = vector.broadcast %95 : vector<1x64xf32> to vector<4x64xf32>
    %97 = arith.addf %94, %96 : vector<4x64xf32>
    %cst_63 = arith.constant 0.000000e+00 : f32
    %98 = vector.broadcast %cst_63 : f32 to vector<4x64xf32>
    %99 = arith.maximumf %97, %98 : vector<4x64xf32>
    %c0_64 = arith.constant 0 : index
    %c0_65 = arith.constant 0 : index
    %100 = vector.load %arg20[%c0_64, %c0_65] : memref<1x64xf32, #tpu.memory_space<vmem>>, vector<1x64xf32>
    %101 = vector.broadcast %100 : vector<1x64xf32> to vector<4x64xf32>
    %102 = arith.mulf %99, %101 : vector<4x64xf32>
    %cst_66 = arith.constant dense<0.000000e+00> : vector<4xf32>
    %103 = vector.multi_reduction <add>, %102, %cst_66 [1] : vector<4x64xf32> to vector<4xf32>
    %104 = vector.shape_cast %103 : vector<4xf32> to vector<4x1xf32>
    %c0_67 = arith.constant 0 : index
    %c0_68 = arith.constant 0 : index
    %105 = vector.load %arg21[%c0_67, %c0_68] : memref<1x1xf32, #tpu.memory_space<vmem>>, vector<1x1xf32>
    %106 = vector.broadcast %105 : vector<1x1xf32> to vector<4x1xf32>
    %107 = arith.addf %104, %106 : vector<4x1xf32>
    %108 = arith.negf %107 : vector<4x1xf32>
    %109 = math.exp %108 : vector<4x1xf32>
    %cst_69 = arith.constant 1.000000e+00 : f32
    %110 = vector.broadcast %cst_69 : f32 to vector<4x1xf32>
    %111 = arith.addf %110, %109 : vector<4x1xf32>
    %112 = arith.divf %110, %111 : vector<4x1xf32>
    %113 = vector.shape_cast %112 : vector<4x1xf32> to vector<4x1xf32>
    %114 = vector.broadcast %113 : vector<4x1xf32> to vector<4x128xf32>
    %c0_70 = arith.constant 0 : index
    %c0_71 = arith.constant 0 : index
    %115 = vector.load %arg22[%c0_70, %c0_71] : memref<4x128xf32, #tpu.memory_space<vmem>>, vector<4x128xf32>
    tpu.vector_store %arg22[%c0_70, %c0_71], %114 {strides = array<i32>} : memref<4x128xf32, #tpu.memory_space<vmem>>, vector<4x128xf32>,
    return
  }
  func.func @transform_0(%arg0: i32) -> (i32, i32) {
    %c0_i32 = arith.constant 0 : i32
    %c0_i32_0 = arith.constant 0 : i32
    return %arg0, %c0_i32 : i32, i32
  }
  func.func @transform_1(%arg0: i32) -> (i32, i32) {
    %c0_i32 = arith.constant 0 : i32
    %c0_i32_0 = arith.constant 0 : i32
    return %arg0, %c0_i32 : i32, i32
  }
  func.func @transform_2(%arg0: i32) -> (i32, i32) {
    %c0_i32 = arith.constant 0 : i32
    %c0_i32_0 = arith.constant 0 : i32
    return %arg0, %c0_i32 : i32, i32
  }
  func.func @transform_3(%arg0: i32) -> (i32, i32) {
    %c0_i32 = arith.constant 0 : i32
    %c0_i32_0 = arith.constant 0 : i32
    %c0_i32_1 = arith.constant 0 : i32
    return %c0_i32, %c0_i32_0 : i32, i32
  }
  func.func @transform_4(%arg0: i32) -> (i32, i32) {
    %c0_i32 = arith.constant 0 : i32
    %c0_i32_0 = arith.constant 0 : i32
    %c0_i32_1 = arith.constant 0 : i32
    return %c0_i32, %c0_i32_0 : i32, i32
  }
  func.func @transform_5(%arg0: i32) -> (i32, i32) {
    %c0_i32 = arith.constant 0 : i32
    %c0_i32_0 = arith.constant 0 : i32
    %c0_i32_1 = arith.constant 0 : i32
    return %c0_i32, %c0_i32_0 : i32, i32
  }
  func.func @transform_6(%arg0: i32) -> (i32, i32) {
    %c0_i32 = arith.constant 0 : i32
    %c0_i32_0 = arith.constant 0 : i32
    %c0_i32_1 = arith.constant 0 : i32
    return %c0_i32, %c0_i32_0 : i32, i32
  }
  func.func @transform_7(%arg0: i32) -> (i32, i32) {
    %c0_i32 = arith.constant 0 : i32
    %c0_i32_0 = arith.constant 0 : i32
    %c0_i32_1 = arith.constant 0 : i32
    return %c0_i32, %c0_i32_0 : i32, i32
  }
  func.func @transform_8(%arg0: i32) -> (i32, i32) {
    %c0_i32 = arith.constant 0 : i32
    %c0_i32_0 = arith.constant 0 : i32
    %c0_i32_1 = arith.constant 0 : i32
    return %c0_i32, %c0_i32_0 : i32, i32
  }
  func.func @transform_9(%arg0: i32) -> (i32, i32) {
    %c0_i32 = arith.constant 0 : i32
    %c0_i32_0 = arith.constant 0 : i32
    %c0_i32_1 = arith.constant 0 : i32
    return %c0_i32, %c0_i32_0 : i32, i32
  }
  func.func @transform_10(%arg0: i32) -> (i32, i32) {
    %c0_i32 = arith.constant 0 : i32
    %c0_i32_0 = arith.constant 0 : i32
    %c0_i32_1 = arith.constant 0 : i32
    return %c0_i32, %c0_i32_0 : i32, i32
  }
  func.func @transform_11(%arg0: i32) -> (i32, i32) {
    %c0_i32 = arith.constant 0 : i32
    %c0_i32_0 = arith.constant 0 : i32
    %c0_i32_1 = arith.constant 0 : i32
    return %c0_i32, %c0_i32_0 : i32, i32
  }
  func.func @transform_12(%arg0: i32) -> (i32, i32) {
    %c0_i32 = arith.constant 0 : i32
    %c0_i32_0 = arith.constant 0 : i32
    %c0_i32_1 = arith.constant 0 : i32
    return %c0_i32, %c0_i32_0 : i32, i32
  }
  func.func @transform_13(%arg0: i32) -> (i32, i32) {
    %c0_i32 = arith.constant 0 : i32
    %c0_i32_0 = arith.constant 0 : i32
    %c0_i32_1 = arith.constant 0 : i32
    return %c0_i32, %c0_i32_0 : i32, i32
  }
  func.func @transform_14(%arg0: i32) -> (i32, i32) {
    %c0_i32 = arith.constant 0 : i32
    %c0_i32_0 = arith.constant 0 : i32
    %c0_i32_1 = arith.constant 0 : i32
    return %c0_i32, %c0_i32_0 : i32, i32
  }
  func.func @transform_15(%arg0: i32) -> (i32, i32) {
    %c0_i32 = arith.constant 0 : i32
    %c0_i32_0 = arith.constant 0 : i32
    %c0_i32_1 = arith.constant 0 : i32
    return %c0_i32, %c0_i32_0 : i32, i32
  }
  func.func @transform_16(%arg0: i32) -> (i32, i32) {
    %c0_i32 = arith.constant 0 : i32
    %c0_i32_0 = arith.constant 0 : i32
    %c0_i32_1 = arith.constant 0 : i32
    return %c0_i32, %c0_i32_0 : i32, i32
  }
  func.func @transform_17(%arg0: i32) -> (i32, i32) {
    %c0_i32 = arith.constant 0 : i32
    %c0_i32_0 = arith.constant 0 : i32
    %c0_i32_1 = arith.constant 0 : i32
    return %c0_i32, %c0_i32_0 : i32, i32
  }
  func.func @transform_18(%arg0: i32) -> (i32, i32) {
    %c0_i32 = arith.constant 0 : i32
    %c0_i32_0 = arith.constant 0 : i32
    %c0_i32_1 = arith.constant 0 : i32
    return %c0_i32, %c0_i32_0 : i32, i32
  }
  func.func @transform_19(%arg0: i32) -> (i32, i32) {
    %c0_i32 = arith.constant 0 : i32
    %c0_i32_0 = arith.constant 0 : i32
    %c0_i32_1 = arith.constant 0 : i32
    return %c0_i32, %c0_i32_0 : i32, i32
  }
  func.func @transform_20(%arg0: i32) -> (i32, i32) {
    %c0_i32 = arith.constant 0 : i32
    %c0_i32_0 = arith.constant 0 : i32
    %c0_i32_1 = arith.constant 0 : i32
    return %c0_i32, %c0_i32_0 : i32, i32
  }
  func.func @transform_21(%arg0: i32) -> (i32, i32) {
    %c0_i32 = arith.constant 0 : i32
    %c0_i32_0 = arith.constant 0 : i32
    return %arg0, %c0_i32 : i32, i32
  }
}

</mosaic_0001>

<llo_original>
// kernel: hybrid_forward.1
$region0: #{hybrid_forward.1}
  #allocation0 [shape = 'u32[]', space=smem, size = 0x4, offset = 0x4, fixed_abs, tag = 'smem constant byte address 0x4 - core index']
  #allocation1 [shape = 'u32[72,128]{1,0:T(1,128)}', space=vmem, size = 0x9000, scoped, tag = 'internal scratch']
  #allocation2 [shape = 'f32[1,1]{1,0:T(1,128)S(1)}', space=vmem, size = 0x200, scoped, tag = 'scoped memory for hybrid_forward.1']
  %s0 = inlined_call_operand.vmem [shape: bf16[4,16], index: 0, kind: input, shape index: {}]
  %s1 = inlined_call_operand.vmem [shape: bf16[32,12], index: 1, kind: input, shape index: {}]
  %s2 = inlined_call_operand.vmem [shape: bf16[32,10], index: 2, kind: input, shape index: {}]
  %s3 = inlined_call_operand.vmem [shape: bf16[16,64], index: 3, kind: input, shape index: {}]
  %s4 = inlined_call_operand.vmem [shape: f32[1,64], index: 4, kind: input, shape index: {}]
  %s5 = inlined_call_operand.vmem [shape: bf16[64,64], index: 5, kind: input, shape index: {}]
  %s6 = inlined_call_operand.vmem [shape: f32[1,64], index: 6, kind: input, shape index: {}]
  %s7 = inlined_call_operand.vmem [shape: bf16[12,32], index: 7, kind: input, shape index: {}]
  %s8 = inlined_call_operand.vmem [shape: f32[1,32], index: 8, kind: input, shape index: {}]
  %s9 = inlined_call_operand.vmem [shape: bf16[32,32], index: 9, kind: input, shape index: {}]
  %s10 = inlined_call_operand.vmem [shape: f32[1,32], index: 10, kind: input, shape index: {}]
  %s11 = inlined_call_operand.vmem [shape: bf16[10,32], index: 11, kind: input, shape index: {}]
  %s12 = inlined_call_operand.vmem [shape: f32[1,32], index: 12, kind: input, shape index: {}]
  %s13 = inlined_call_operand.vmem [shape: bf16[32,32], index: 13, kind: input, shape index: {}]
  %s14 = inlined_call_operand.vmem [shape: f32[1,32], index: 14, kind: input, shape index: {}]
  %s15 = inlined_call_operand.vmem [shape: bf16[64,64], index: 15, kind: input, shape index: {}]
  %s16 = inlined_call_operand.vmem [shape: bf16[32,64], index: 16, kind: input, shape index: {}]
  %s17 = inlined_call_operand.vmem [shape: bf16[32,64], index: 17, kind: input, shape index: {}]
  %s18 = inlined_call_operand.vmem [shape: f32[1,64], index: 18, kind: input, shape index: {}]
  %s19 = inlined_call_operand.vmem [shape: f32[1,64], index: 19, kind: input, shape index: {}]
  %s20 = inlined_call_operand.<no memory space> [shape: f32[1,1], index: 20, kind: input, shape index: {}]
  %s21 = inlined_call_operand.vmem [shape: f32[4,128], index: 21, kind: output, shape index: {}]
  %s22 = sld [smem:[#allocation0]]
  $region94: #{hybrid_forward.1} parent=0
    _
  %s24 = ssub.s32 1, %s22
  %s25 = scalar_select 0, %s24, %s22
  %v26 = vstv %s20
  %27 = vst [vmem:[#allocation2] sm:$0x1] %v26
  // Predicated region
  $region2: #{hybrid_forward.1} parent=0 // pred_check
    _
  $region3: #{hybrid_forward.1} parent=0 // pred_check_branch
    %29 = sbr.rel (0) target = $region5
  $region4: #{hybrid_forward.1} parent=0 // pred_region
    _
  $region5: #{hybrid_forward.1} parent=0 // pred_fallthru
    _
  // Predicated region
  $region6: #{hybrid_forward.1} parent=0 // pred_check
    _
  $region7: #{hybrid_forward.1} parent=0 // pred_check_branch
    %31 = sbr.rel (0) target = $region9
  $region8: #{hybrid_forward.1} parent=0 // pred_region
    _
  $region9: #{hybrid_forward.1} parent=0 // pred_fallthru
    _
  // Predicated region
  $region10: #{hybrid_forward.1} parent=0 // pred_check
    _
  $region11: #{hybrid_forward.1} parent=0 // pred_check_branch
    %33 = sbr.rel (0) target = $region13
  $region12: #{hybrid_forward.1} parent=0 // pred_region
    _
  $region13: #{hybrid_forward.1} parent=0 // pred_fallthru
    _
  // Predicated region
  $region14: #{hybrid_forward.1} parent=0 // pred_check
    _
  $region15: #{hybrid_forward.1} parent=0 // pred_check_branch
    %35 = sbr.rel (0) target = $region17
  $region16: #{hybrid_forward.1} parent=0 // pred_region
    _
  $region17: #{hybrid_forward.1} parent=0 // pred_fallthru
    _
  // Predicated region
  $region18: #{hybrid_forward.1} parent=0 // pred_check
    _
  $region19: #{hybrid_forward.1} parent=0 // pred_check_branch
    %37 = sbr.rel (0) target = $region21
  $region20: #{hybrid_forward.1} parent=0 // pred_region
    _
  $region21: #{hybrid_forward.1} parent=0 // pred_fallthru
    _
  // Predicated region
  $region22: #{hybrid_forward.1} parent=0 // pred_check
    _
  $region23: #{hybrid_forward.1} parent=0 // pred_check_branch
    %39 = sbr.rel (0) target = $region25
  $region24: #{hybrid_forward.1} parent=0 // pred_region
    _
  $region25: #{hybrid_forward.1} parent=0 // pred_fallthru
    _
  // Predicated region
  $region26: #{hybrid_forward.1} parent=0 // pred_check
    _
  $region27: #{hybrid_forward.1} parent=0 // pred_check_branch
    %41 = sbr.rel (0) target = $region29
  $region28: #{hybrid_forward.1} parent=0 // pred_region
    _
  $region29: #{hybrid_forward.1} parent=0 // pred_fallthru
    _
  // Predicated region
  $region30: #{hybrid_forward.1} parent=0 // pred_check
    _
  $region31: #{hybrid_forward.1} parent=0 // pred_check_branch
    %43 = sbr.rel (0) target = $region33
  $region32: #{hybrid_forward.1} parent=0 // pred_region
    _
  $region33: #{hybrid_forward.1} parent=0 // pred_fallthru
    _
  // Predicated region
  $region34: #{hybrid_forward.1} parent=0 // pred_check
    _
  $region35: #{hybrid_forward.1} parent=0 // pred_check_branch
    %45 = sbr.rel (0) target = $region37
  $region36: #{hybrid_forward.1} parent=0 // pred_region
    _
  $region37: #{hybrid_forward.1} parent=0 // pred_fallthru
    _
  // Predicated region
  $region38: #{hybrid_forward.1} parent=0 // pred_check
    _
  $region39: #{hybrid_forward.1} parent=0 // pred_check_branch
    %47 = sbr.rel (0) target = $region41
  $region40: #{hybrid_forward.1} parent=0 // pred_region
    _
  $region41: #{hybrid_forward.1} parent=0 // pred_fallthru
    _
  // Predicated region
  $region42: #{hybrid_forward.1} parent=0 // pred_check
    _
  $region43: #{hybrid_forward.1} parent=0 // pred_check_branch
    %49 = sbr.rel (0) target = $region45
  $region44: #{hybrid_forward.1} parent=0 // pred_region
    _
  $region45: #{hybrid_forward.1} parent=0 // pred_fallthru
    _
  // Predicated region
  $region46: #{hybrid_forward.1} parent=0 // pred_check
    _
  $region47: #{hybrid_forward.1} parent=0 // pred_check_branch
    %51 = sbr.rel (0) target = $region49
  $region48: #{hybrid_forward.1} parent=0 // pred_region
    _
  $region49: #{hybrid_forward.1} parent=0 // pred_fallthru
    _
  // Predicated region
  $region50: #{hybrid_forward.1} parent=0 // pred_check
    _
  $region51: #{hybrid_forward.1} parent=0 // pred_check_branch
    %53 = sbr.rel (0) target = $region53
  $region52: #{hybrid_forward.1} parent=0 // pred_region
    _
  $region53: #{hybrid_forward.1} parent=0 // pred_fallthru
    _
  // Predicated region
  $region54: #{hybrid_forward.1} parent=0 // pred_check
    _
  $region55: #{hybrid_forward.1} parent=0 // pred_check_branch
    %55 = sbr.rel (0) target = $region57
  $region56: #{hybrid_forward.1} parent=0 // pred_region
    _
  $region57: #{hybrid_forward.1} parent=0 // pred_fallthru
    _
  // Predicated region
  $region58: #{hybrid_forward.1} parent=0 // pred_check
    _
  $region59: #{hybrid_forward.1} parent=0 // pred_check_branch
    %57 = sbr.rel (0) target = $region61
  $region60: #{hybrid_forward.1} parent=0 // pred_region
    _
  $region61: #{hybrid_forward.1} parent=0 // pred_fallthru
    _
  // Predicated region
  $region62: #{hybrid_forward.1} parent=0 // pred_check
    _
  $region63: #{hybrid_forward.1} parent=0 // pred_check_branch
    %59 = sbr.rel (0) target = $region65
  $region64: #{hybrid_forward.1} parent=0 // pred_region
    _
  $region65: #{hybrid_forward.1} parent=0 // pred_fallthru
    _
  // Predicated region
  $region66: #{hybrid_forward.1} parent=0 // pred_check
    _
  $region67: #{hybrid_forward.1} parent=0 // pred_check_branch
    %61 = sbr.rel (0) target = $region69
  $region68: #{hybrid_forward.1} parent=0 // pred_region
    _
  $region69: #{hybrid_forward.1} parent=0 // pred_fallthru
    _
  // Predicated region
  $region70: #{hybrid_forward.1} parent=0 // pred_check
    _
  $region71: #{hybrid_forward.1} parent=0 // pred_check_branch
    %63 = sbr.rel (0) target = $region73
  $region72: #{hybrid_forward.1} parent=0 // pred_region
    _
  $region73: #{hybrid_forward.1} parent=0 // pred_fallthru
    _
  // Predicated region
  $region74: #{hybrid_forward.1} parent=0 // pred_check
    _
  $region75: #{hybrid_forward.1} parent=0 // pred_check_branch
    %65 = sbr.rel (0) target = $region77
  $region76: #{hybrid_forward.1} parent=0 // pred_region
    _
  $region77: #{hybrid_forward.1} parent=0 // pred_fallthru
    _
  // Predicated region
  $region78: #{hybrid_forward.1} parent=0 // pred_check
    _
  $region79: #{hybrid_forward.1} parent=0 // pred_check_branch
    %67 = sbr.rel (0) target = $region81
  $region80: #{hybrid_forward.1} parent=0 // pred_region
    _
  $region81: #{hybrid_forward.1} parent=0 // pred_fallthru
    _
  // Predicated region
  $region82: #{hybrid_forward.1} parent=0 // pred_check
    _
  $region83: #{hybrid_forward.1} parent=0 // pred_check_branch
    %69 = sbr.rel (0) target = $region85
  $region84: #{hybrid_forward.1} parent=0 // pred_region
    _
  $region85: #{hybrid_forward.1} parent=0 // pred_fallthru
    _
  %v71 = vld [vmem:[%s0] sm:$0x3]
  %v72 = vld [vmem:[%s3] sm:$0xf]
  %v73 = vld [vmem:[%s3 + $0x4] sm:$0xf]
  %v74 = vld [vmem:[%s4] sm:$0x1]
  %v76 = vperm.slane %v74, 0
  %v80 = vunpack.c.l.b16 %v72
  %v81 = vunpack.c.l.b16 %v73
  %v82 = vpack.c.b16 %v81, %v80
  %vm84 = vcmask 130048
  %v86 = vsel %vm84, %v71, 0
  %88 = vmatpush.bf16.msra.mxu0 0
  %89 = vmatpush.bf16.msra.mxu0 0
  %90 = vmatpush.bf16.msra.mxu0 0
  %91 = vmatpush.bf16.msra.mxu0 0
  %92 = vmatpush.bf16.msra.mxu0 0
  %93 = vmatpush.bf16.msra.mxu0 0
  %94 = vmatpush.bf16.msra.mxu0 0
  %95 = vmatpush.bf16.msra.mxu0 %v82
  %96 = vmatmul.bf16.gmra.mxu0 %v86
  %v97 = vpop.f32.mrf.mxu0
  %v98 = vadd.f32 %v76, %v97
  %v99 = vpop.f32.mrf.mxu0
  %100 = vdwg.mxu0
  %v101 = vmax.f32 %v98, 0.0
  %v102 = vpack.c.bf16 %v101, %v101
  %v103 = vld [vmem:[%s5] sm:$0xf]
  %v104 = vld [vmem:[%s5 + $0x4] sm:$0xf]
  %v105 = vld [vmem:[%s5 + $0x8] sm:$0xf]
  %v106 = vld [vmem:[%s5 + $0xc] sm:$0xf]
  %v107 = vld [vmem:[%s5 + $0x10] sm:$0xf]
  %v108 = vld [vmem:[%s5 + $0x14] sm:$0xf]
  %v109 = vld [vmem:[%s5 + $0x18] sm:$0xf]
  %v110 = vld [vmem:[%s5 + $0x1c] sm:$0xf]
  %v111 = vld [vmem:[%s6] sm:$0x1]
  %v113 = vperm.slane %v111, 0
  %v123 = vunpack.c.l.b16 %v103
  %v124 = vunpack.c.l.b16 %v104
  %v125 = vunpack.c.l.b16 %v105
  %v126 = vunpack.c.l.b16 %v106
  %v127 = vunpack.c.l.b16 %v107
  %v128 = vunpack.c.l.b16 %v108
  %v129 = vunpack.c.l.b16 %v109
  %v130 = vunpack.c.l.b16 %v110
  %v131 = vpack.c.b16 %v124, %v123
  %v132 = vpack.c.b16 %v126, %v125
  %v133 = vpack.c.b16 %v128, %v127
  %v134 = vpack.c.b16 %v130, %v129
  %vm139 = vcmask 523264
  %v141 = vsel %vm139, %v102, 0
  %143 = vmatpush.bf16.msra.mxu0 0
  %144 = vmatpush.bf16.msra.mxu0 0
  %145 = vmatpush.bf16.msra.mxu0 0
  %146 = vmatpush.bf16.msra.mxu0 0
  %147 = vmatpush.bf16.msra.mxu0 %v134
  %148 = vmatpush.bf16.msra.mxu0 %v133
  %149 = vmatpush.bf16.msra.mxu0 %v132
  %150 = vmatpush.bf16.msra.mxu0 %v131
  %151 = vmatmul.bf16.gmra.mxu0 %v141
  %v152 = vpop.f32.mrf.mxu0
  %v153 = vadd.f32 %v113, %v152
  %v154 = vpop.f32.mrf.mxu0
  %155 = vdwg.mxu0
  %v156 = vld [vmem:[%s1] sm:$0xf]
  %v157 = vld [vmem:[%s1 + $0x4] sm:$0xf]
  %v158 = vld [vmem:[%s1 + $0x8] sm:$0xf]
  %v159 = vld [vmem:[%s1 + $0xc] sm:$0xf]
  %v160 = vld [vmem:[%s7] sm:$0xf]
  %v161 = vld [vmem:[%s7 + $0x4] sm:$0x3]
  %v162 = vld [vmem:[%s8] sm:$0x1]
  %v164 = vperm.slane %v162, 0
  %v170 = vunpack.c.l.b16 %v156
  %v171 = vunpack.c.l.b16 %v157
  %v172 = vunpack.c.l.b16 %v158
  %v173 = vunpack.c.l.b16 %v159
  %v174 = vpack.c.b16 %v171, %v170
  %v175 = vpack.c.b16 %v173, %v172
  %v178 = vunpack.c.l.b16 %v160
  %v179 = vunpack.c.l.b16 %v161
  %v180 = vpack.c.b16 %v179, %v178
  %vm181 = vcmask 97280
  %v183 = vsel %vm181, %v174, 0
  %v186 = vsel %vm181, %v175, 0
  %vm188 = vcmask 1045504
  %v190 = vsel %vm188, %v180, 0
  %192 = vmatpush.bf16.msra.mxu0 0
  %193 = vmatpush.bf16.msra.mxu0 0
  %194 = vmatpush.bf16.msra.mxu0 0
  %195 = vmatpush.bf16.msra.mxu0 0
  %196 = vmatpush.bf16.msra.mxu0 0
  %197 = vmatpush.bf16.msra.mxu0 0
  %198 = vmatpush.bf16.msra.mxu0 0
  %199 = vmatpush.bf16.msra.mxu0 %v190
  %200 = vmatmul.bf16.gmra.mxu0 %v183
  %v201 = vpop.f32.mrf.mxu0
  %v202 = vadd.f32 %v164, %v201
  %v203 = vpop.f32.mrf.mxu0
  %v204 = vadd.f32 %v164, %v203
  %205 = vmatmul.bf16.gmra.mxu0 %v186
  %v206 = vpop.f32.mrf.mxu0
  %v207 = vadd.f32 %v164, %v206
  %v208 = vpop.f32.mrf.mxu0
  %v209 = vadd.f32 %v164, %v208
  %210 = vdwg.mxu0
  %v211 = vmax.f32 %v202, 0.0
  %v212 = vmax.f32 %v204, 0.0
  %v213 = vmax.f32 %v207, 0.0
  %v214 = vmax.f32 %v209, 0.0
  %v215 = vpack.c.bf16 %v212, %v211
  %v216 = vpack.c.bf16 %v214, %v213
  %v217 = vld [vmem:[%s9] sm:$0xf]
  %v218 = vld [vmem:[%s9 + $0x4] sm:$0xf]
  %v219 = vld [vmem:[%s9 + $0x8] sm:$0xf]
  %v220 = vld [vmem:[%s9 + $0xc] sm:$0xf]
  %v221 = vld [vmem:[%s10] sm:$0x1]
  %v223 = vperm.slane %v221, 0
  %v229 = vunpack.c.l.b16 %v217
  %v230 = vunpack.c.l.b16 %v218
  %v231 = vunpack.c.l.b16 %v219
  %v232 = vunpack.c.l.b16 %v220
  %v233 = vpack.c.b16 %v230, %v229
  %v234 = vpack.c.b16 %v232, %v231
  %vm237 = vcmask 261120
  %v239 = vsel %vm237, %v215, 0
  %v242 = vsel %vm237, %v216, 0
  %244 = vmatpush.bf16.msra.mxu0 0
  %245 = vmatpush.bf16.msra.mxu0 0
  %246 = vmatpush.bf16.msra.mxu0 0
  %247 = vmatpush.bf16.msra.mxu0 0
  %248 = vmatpush.bf16.msra.mxu0 0
  %249 = vmatpush.bf16.msra.mxu0 0
  %250 = vmatpush.bf16.msra.mxu0 %v234
  %251 = vmatpush.bf16.msra.mxu0 %v233
  %252 = vmatmul.bf16.gmra.mxu0 %v239
  %v253 = vpop.f32.mrf.mxu0
  %v254 = vadd.f32 %v223, %v253
  %v255 = vpop.f32.mrf.mxu0
  %v256 = vadd.f32 %v223, %v255
  %257 = vmatmul.bf16.gmra.mxu0 %v242
  %v258 = vpop.f32.mrf.mxu0
  %v259 = vadd.f32 %v223, %v258
  %v260 = vpop.f32.mrf.mxu0
  %v261 = vadd.f32 %v223, %v260
  %262 = vdwg.mxu0
  %v263 = vmax.f32 %v254, 0.0
  %v264 = vmax.f32 %v256, 0.0
  %v265 = vmax.f32 %v259, 0.0
  %v266 = vmax.f32 %v261, 0.0
  %v267 = vsel %vm237, %v263, 0.0
  %v268 = vrot.slane %v267, 4
  %v269 = vadd.f32 %v267, %v268
  %v270 = vrot.slane %v269, 2
  %v271 = vadd.f32 %v269, %v270
  %v272 = vrot.slane %v271, 1
  %v273 = vadd.f32 %v271, %v272
  %v274 = vsel %vm237, %v264, 0.0
  %v275 = vrot.slane %v274, 4
  %v276 = vadd.f32 %v274, %v275
  %v277 = vrot.slane %v276, 2
  %v278 = vadd.f32 %v276, %v277
  %v279 = vrot.slane %v278, 1
  %v280 = vadd.f32 %v278, %v279
  %v281 = vsel %vm237, %v265, 0.0
  %v282 = vrot.slane %v281, 4
  %v283 = vadd.f32 %v281, %v282
  %v284 = vrot.slane %v283, 2
  %v285 = vadd.f32 %v283, %v284
  %v286 = vrot.slane %v285, 1
  %v287 = vadd.f32 %v285, %v286
  %v288 = vsel %vm237, %v266, 0.0
  %v289 = vrot.slane %v288, 4
  %v290 = vadd.f32 %v288, %v289
  %v291 = vrot.slane %v290, 2
  %v292 = vadd.f32 %v290, %v291
  %v293 = vrot.slane %v292, 1
  %v294 = vadd.f32 %v292, %v293
  %v295 = vmul.f32 %v273, 0.125
  %v296 = vmul.f32 %v280, 0.125
  %v297 = vmul.f32 %v287, 0.125
  %v298 = vmul.f32 %v294, 0.125
  %v299 = vld [vmem:[%s2] sm:$0xf]
  %v300 = vld [vmem:[%s2 + $0x4] sm:$0xf]
  %v301 = vld [vmem:[%s2 + $0x8] sm:$0xf]
  %v302 = vld [vmem:[%s2 + $0xc] sm:$0xf]
  %v303 = vld [vmem:[%s11] sm:$0xf]
  %v304 = vld [vmem:[%s11 + $0x4] sm:$0x1]
  %v305 = vld [vmem:[%s12] sm:$0x1]
  %v307 = vperm.slane %v305, 0
  %v313 = vunpack.c.l.b16 %v299
  %v314 = vunpack.c.l.b16 %v300
  %v315 = vunpack.c.l.b16 %v301
  %v316 = vunpack.c.l.b16 %v302
  %v317 = vpack.c.b16 %v314, %v313
  %v318 = vpack.c.b16 %v316, %v315
  %v321 = vunpack.c.l.b16 %v303
  %v322 = vunpack.c.l.b16 %v304
  %v323 = vpack.c.b16 %v322, %v321
  %vm324 = vcmask 80896
  %v326 = vsel %vm324, %v317, 0
  %v329 = vsel %vm324, %v318, 0
  %vm331 = vcmask 1044480
  %v333 = vsel %vm331, %v323, 0
  %335 = vmatpush.bf16.msra.mxu0 0
  %336 = vmatpush.bf16.msra.mxu0 0
  %337 = vmatpush.bf16.msra.mxu0 0
  %338 = vmatpush.bf16.msra.mxu0 0
  %339 = vmatpush.bf16.msra.mxu0 0
  %340 = vmatpush.bf16.msra.mxu0 0
  %341 = vmatpush.bf16.msra.mxu0 0
  %342 = vmatpush.bf16.msra.mxu0 %v333
  %343 = vmatmul.bf16.gmra.mxu0 %v326
  %v344 = vpop.f32.mrf.mxu0
  %v345 = vadd.f32 %v307, %v344
  %v346 = vpop.f32.mrf.mxu0
  %v347 = vadd.f32 %v307, %v346
  %348 = vmatmul.bf16.gmra.mxu0 %v329
  %v349 = vpop.f32.mrf.mxu0
  %v350 = vadd.f32 %v307, %v349
  %v351 = vpop.f32.mrf.mxu0
  %v352 = vadd.f32 %v307, %v351
  %353 = vdwg.mxu0
  %v354 = vmax.f32 %v345, 0.0
  %v355 = vmax.f32 %v347, 0.0
  %v356 = vmax.f32 %v350, 0.0
  %v357 = vmax.f32 %v352, 0.0
  %v358 = vpack.c.bf16 %v355, %v354
  %v359 = vpack.c.bf16 %v357, %v356
  %v360 = vld [vmem:[%s13] sm:$0xf]
  %v361 = vld [vmem:[%s13 + $0x4] sm:$0xf]
  %v362 = vld [vmem:[%s13 + $0x8] sm:$0xf]
  %v363 = vld [vmem:[%s13 + $0xc] sm:$0xf]
  %v364 = vld [vmem:[%s14] sm:$0x1]
  %v366 = vperm.slane %v364, 0
  %v372 = vunpack.c.l.b16 %v360
  %v373 = vunpack.c.l.b16 %v361
  %v374 = vunpack.c.l.b16 %v362
  %v375 = vunpack.c.l.b16 %v363
  %v376 = vpack.c.b16 %v373, %v372
  %v377 = vpack.c.b16 %v375, %v374
  %v381 = vsel %vm237, %v358, 0
  %v384 = vsel %vm237, %v359, 0
  %386 = vmatpush.bf16.msra.mxu0 0
  %387 = vmatpush.bf16.msra.mxu0 0
  %388 = vmatpush.bf16.msra.mxu0 0
  %389 = vmatpush.bf16.msra.mxu0 0
  %390 = vmatpush.bf16.msra.mxu0 0
  %391 = vmatpush.bf16.msra.mxu0 0
  %392 = vmatpush.bf16.msra.mxu0 %v377
  %393 = vmatpush.bf16.msra.mxu0 %v376
  %394 = vmatmul.bf16.gmra.mxu0 %v381
  %v395 = vpop.f32.mrf.mxu0
  %v396 = vadd.f32 %v366, %v395
  %v397 = vpop.f32.mrf.mxu0
  %v398 = vadd.f32 %v366, %v397
  %399 = vmatmul.bf16.gmra.mxu0 %v384
  %v400 = vpop.f32.mrf.mxu0
  %v401 = vadd.f32 %v366, %v400
  %v402 = vpop.f32.mrf.mxu0
  %v403 = vadd.f32 %v366, %v402
  %404 = vdwg.mxu0
  %v405 = vmax.f32 %v396, 0.0
  %v406 = vmax.f32 %v398, 0.0
  %v407 = vmax.f32 %v401, 0.0
  %v408 = vmax.f32 %v403, 0.0
  %v409 = vsel %vm237, %v405, 0.0
  %v410 = vrot.slane %v409, 4
  %v411 = vadd.f32 %v409, %v410
  %v412 = vrot.slane %v411, 2
  %v413 = vadd.f32 %v411, %v412
  %v414 = vrot.slane %v413, 1
  %v415 = vadd.f32 %v413, %v414
  %v416 = vsel %vm237, %v406, 0.0
  %v417 = vrot.slane %v416, 4
  %v418 = vadd.f32 %v416, %v417
  %v419 = vrot.slane %v418, 2
  %v420 = vadd.f32 %v418, %v419
  %v421 = vrot.slane %v420, 1
  %v422 = vadd.f32 %v420, %v421
  %v423 = vsel %vm237, %v407, 0.0
  %v424 = vrot.slane %v423, 4
  %v425 = vadd.f32 %v423, %v424
  %v426 = vrot.slane %v425, 2
  %v427 = vadd.f32 %v425, %v426
  %v428 = vrot.slane %v427, 1
  %v429 = vadd.f32 %v427, %v428
  %v430 = vsel %vm237, %v408, 0.0
  %v431 = vrot.slane %v430, 4
  %v432 = vadd.f32 %v430, %v431
  %v433 = vrot.slane %v432, 2
  %v434 = vadd.f32 %v432, %v433
  %v435 = vrot.slane %v434, 1
  %v436 = vadd.f32 %v434, %v435
  %v437 = vmul.f32 %v415, 0.125
  %v438 = vmul.f32 %v422, 0.125
  %v439 = vmul.f32 %v429, 0.125
  %v440 = vmul.f32 %v436, 0.125
  %v441 = vmul.f32 %v153, %v153
  %vm442 = vcmask 519168
  %v443 = vsel %vm442, %v441, 0.0
  %444 = vadd.xlane.f32.xlu0 %v443
  %v445 = vpop.xlane.xlu0 %444
  %v446 = vmax.f32 %v445, 1e-24
  %v447 = vrsqrt.pop %v446
  %v448 = vmul.f32 %v447, %v446
  %v449 = vmul.f32 %v448, %v447
  %v450 = vmul.f32 0.5, %v449
  %v451 = vsub.f32 1.5, %v450
  %v452 = vmul.f32 %v447, %v451
  %vm453 = vweird.f32 %v446
  %vm454 = vweird.f32 %v447
  %vm455 = vmor %vm453, %vm454
  %v456 = vsel %vm455, %v447, %v452
  %v457 = vmul.f32 %v153, %v456
  %v458 = vmax.f32 %v457, 0.0
  %v459 = vmul.f32 %v295, %v295
  %v460 = vmul.f32 %v296, %v296
  %v461 = vmul.f32 %v297, %v297
  %v462 = vmul.f32 %v298, %v298
  %vm467 = vcmask 1041409
  %v468 = vsel %vm467, %v460, %v459
  %vm469 = vcmask 1042434
  %v470 = vsel %vm469, %v461, %v468
  %vm471 = vcmask 1043459
  %v472 = vsel %vm471, %v462, %v470
  %vm474 = vcmask 257024
  %v475 = vsel %vm474, %v472, 0.0
  %476 = vadd.xlane.f32.xlu0 %v475
  %v477 = vpop.xlane.xlu0 %476
  %v478 = vmax.f32 %v477, 1e-24
  %v479 = vrsqrt.pop %v478
  %v480 = vmul.f32 %v479, %v478
  %v481 = vmul.f32 %v480, %v479
  %v482 = vmul.f32 0.5, %v481
  %v483 = vsub.f32 1.5, %v482
  %v484 = vmul.f32 %v479, %v483
  %vm485 = vweird.f32 %v478
  %vm486 = vweird.f32 %v479
  %vm487 = vmor %vm485, %vm486
  %v488 = vsel %vm487, %v479, %v484
  %v490 = vrot.slane %v488, 1
  %v491 = vrot.slane %v488, 2
  %v492 = vrot.slane %v488, 3
  %v497 = vmul.f32 %v295, %v488
  %v498 = vmul.f32 %v296, %v490
  %v499 = vmul.f32 %v297, %v491
  %v500 = vmul.f32 %v298, %v492
  %v501 = vmax.f32 %v497, 0.0
  %v502 = vmax.f32 %v498, 0.0
  %v503 = vmax.f32 %v499, 0.0
  %v504 = vmax.f32 %v500, 0.0
  %v505 = vmul.f32 %v437, %v437
  %v506 = vmul.f32 %v438, %v438
  %v507 = vmul.f32 %v439, %v439
  %v508 = vmul.f32 %v440, %v440
  %v513 = vsel %vm467, %v506, %v505
  %v514 = vsel %vm469, %v507, %v513
  %v515 = vsel %vm471, %v508, %v514
  %v517 = vsel %vm474, %v515, 0.0
  %518 = vadd.xlane.f32.xlu0 %v517
  %v519 = vpop.xlane.xlu0 %518
  %v520 = vmax.f32 %v519, 1e-24
  %v521 = vrsqrt.pop %v520
  %v522 = vmul.f32 %v521, %v520
  %v523 = vmul.f32 %v522, %v521
  %v524 = vmul.f32 0.5, %v523
  %v525 = vsub.f32 1.5, %v524
  %v526 = vmul.f32 %v521, %v525
  %vm527 = vweird.f32 %v520
  %vm528 = vweird.f32 %v521
  %vm529 = vmor %vm527, %vm528
  %v530 = vsel %vm529, %v521, %v526
  %v532 = vrot.slane %v530, 1
  %v533 = vrot.slane %v530, 2
  %v534 = vrot.slane %v530, 3
  %v539 = vmul.f32 %v437, %v530
  %v540 = vmul.f32 %v438, %v532
  %v541 = vmul.f32 %v439, %v533
  %v542 = vmul.f32 %v440, %v534
  %v543 = vmax.f32 %v539, 0.0
  %v544 = vmax.f32 %v540, 0.0
  %v545 = vmax.f32 %v541, 0.0
  %v546 = vmax.f32 %v542, 0.0
  %v547 = vpack.c.bf16 %v458, %v458
  %v548 = vld [vmem:[%s15] sm:$0xf]
  %v549 = vld [vmem:[%s15 + $0x4] sm:$0xf]
  %v550 = vld [vmem:[%s15 + $0x8] sm:$0xf]
  %v551 = vld [vmem:[%s15 + $0xc] sm:$0xf]
  %v552 = vld [vmem:[%s15 + $0x10] sm:$0xf]
  %v553 = vld [vmem:[%s15 + $0x14] sm:$0xf]
  %v554 = vld [vmem:[%s15 + $0x18] sm:$0xf]
  %v555 = vld [vmem:[%s15 + $0x1c] sm:$0xf]
  %v556 = vpack.c.bf16 %v501, %v501
  %v557 = vpack.c.bf16 %v502, %v502
  %v558 = vpack.c.bf16 %v503, %v503
  %v559 = vpack.c.bf16 %v504, %v504
  %v560 = vld [vmem:[%s16] sm:$0xf]
  %v561 = vld [vmem:[%s16 + $0x4] sm:$0xf]
  %v562 = vld [vmem:[%s16 + $0x8] sm:$0xf]
  %v563 = vld [vmem:[%s16 + $0xc] sm:$0xf]
  %v568 = vunpack.c.l.b16 %v556
  %v569 = vunpack.c.l.b16 %v557
  %v570 = vunpack.c.l.b16 %v558
  %v571 = vunpack.c.l.b16 %v559
  %v572 = vrot.slane %v569, 7
  %v573 = vsel %vm467, %v572, %v568
  %v574 = vrot.slane %v570, 6
  %v575 = vsel %vm469, %v574, %v573
  %v576 = vrot.slane %v571, 5
  %v577 = vsel %vm471, %v576, %v575
  %v578 = vpack.c.b16 %v577, %v577
  %v583 = vunpack.c.l.b16 %v560
  %v584 = vunpack.c.l.b16 %v561
  %v585 = vunpack.c.l.b16 %v562
  %v586 = vunpack.c.l.b16 %v563
  %v587 = vpack.c.b16 %v584, %v583
  %v588 = vpack.c.b16 %v586, %v585
  %v592 = vsel %vm237, %v578, 0
  %594 = vmatpush.bf16.msra.mxu0 0
  %595 = vmatpush.bf16.msra.mxu0 0
  %596 = vmatpush.bf16.msra.mxu0 0
  %597 = vmatpush.bf16.msra.mxu0 0
  %598 = vmatpush.bf16.msra.mxu0 0
  %599 = vmatpush.bf16.msra.mxu0 0
  %600 = vmatpush.bf16.msra.mxu0 %v588
  %601 = vmatpush.bf16.msra.mxu0 %v587
  %602 = vmatmul.bf16.gmra.mxu0 %v592
  %v603 = vpop.f32.mrf.mxu0
  %v604 = vadd.f32 0.0, %v603
  %v605 = vpop.f32.mrf.mxu0
  %606 = vdwg.mxu0
  %v615 = vunpack.c.l.b16 %v548
  %v616 = vunpack.c.l.b16 %v549
  %v617 = vunpack.c.l.b16 %v550
  %v618 = vunpack.c.l.b16 %v551
  %v619 = vunpack.c.l.b16 %v552
  %v620 = vunpack.c.l.b16 %v553
  %v621 = vunpack.c.l.b16 %v554
  %v622 = vunpack.c.l.b16 %v555
  %v623 = vpack.c.b16 %v616, %v615
  %v624 = vpack.c.b16 %v618, %v617
  %v625 = vpack.c.b16 %v620, %v619
  %v626 = vpack.c.b16 %v622, %v621
  %v632 = vsel %vm139, %v547, 0
  %634 = vmatpush.bf16.msra.mxu0 0
  %635 = vmatpush.bf16.msra.mxu0 0
  %636 = vmatpush.bf16.msra.mxu0 0
  %637 = vmatpush.bf16.msra.mxu0 0
  %638 = vmatpush.bf16.msra.mxu0 %v626
  %639 = vmatpush.bf16.msra.mxu0 %v625
  %640 = vmatpush.bf16.msra.mxu0 %v624
  %641 = vmatpush.bf16.msra.mxu0 %v623
  %642 = vmatmul.bf16.gmra.mxu0 %v632
  %v643 = vpop.f32.mrf.mxu0
  %v644 = vadd.f32 %v604, %v643
  %v645 = vpop.f32.mrf.mxu0
  %646 = vdwg.mxu0
  %v647 = vpack.c.bf16 %v543, %v543
  %v648 = vpack.c.bf16 %v544, %v544
  %v649 = vpack.c.bf16 %v545, %v545
  %v650 = vpack.c.bf16 %v546, %v546
  %v651 = vld [vmem:[%s17] sm:$0xf]
  %v652 = vld [vmem:[%s17 + $0x4] sm:$0xf]
  %v653 = vld [vmem:[%s17 + $0x8] sm:$0xf]
  %v654 = vld [vmem:[%s17 + $0xc] sm:$0xf]
  %v659 = vunpack.c.l.b16 %v647
  %v660 = vunpack.c.l.b16 %v648
  %v661 = vunpack.c.l.b16 %v649
  %v662 = vunpack.c.l.b16 %v650
  %v663 = vrot.slane %v660, 7
  %v664 = vsel %vm467, %v663, %v659
  %v665 = vrot.slane %v661, 6
  %v666 = vsel %vm469, %v665, %v664
  %v667 = vrot.slane %v662, 5
  %v668 = vsel %vm471, %v667, %v666
  %v669 = vpack.c.b16 %v668, %v668
  %v674 = vunpack.c.l.b16 %v651
  %v675 = vunpack.c.l.b16 %v652
  %v676 = vunpack.c.l.b16 %v653
  %v677 = vunpack.c.l.b16 %v654
  %v678 = vpack.c.b16 %v675, %v674
  %v679 = vpack.c.b16 %v677, %v676
  %v683 = vsel %vm237, %v669, 0
  %685 = vmatpush.bf16.msra.mxu0 0
  %686 = vmatpush.bf16.msra.mxu0 0
  %687 = vmatpush.bf16.msra.mxu0 0
  %688 = vmatpush.bf16.msra.mxu0 0
  %689 = vmatpush.bf16.msra.mxu0 0
  %690 = vmatpush.bf16.msra.mxu0 0
  %691 = vmatpush.bf16.msra.mxu0 %v679
  %692 = vmatpush.bf16.msra.mxu0 %v678
  %693 = vmatmul.bf16.gmra.mxu0 %v683
  %v694 = vpop.f32.mrf.mxu0
  %v695 = vadd.f32 0.0, %v694
  %v696 = vpop.f32.mrf.mxu0
  %697 = vdwg.mxu0
  %v698 = vadd.f32 %v644, %v695
  %v699 = vld [vmem:[%s18] sm:$0x1]
  %v701 = vperm.slane %v699, 0
  %v703 = vadd.f32 %v698, %v701
  %v704 = vmax.f32 %v703, 0.0
  %v705 = vld [vmem:[%s19] sm:$0x1]
  %v707 = vperm.slane %v705, 0
  %v709 = vmul.f32 %v704, %v707
  %v710 = vsel %vm442, %v709, 0.0
  %711 = vadd.xlane.f32.xlu0 %v710
  %v712 = vpop.xlane.xlu0 %711
  %v713 = vld [vmem:[#allocation2] sm:$0x1]
  %v715 = vperm.slane %v713, 0
  %v717 = vadd.f32 %v712, %v715
  %v718 = vxor.u32 %v717, 2147483648
  %v719 = vmul.f32 %v718, 1.442695
  %v720 = vpow.pop %v719
  %v721 = vadd.f32 %v720, 1.0
  %v722 = vrcp.pop %v721
  %v723 = vmul.f32 %v721, %v722
  %v724 = vsub.f32 1.0, %v723
  %v725 = vmul.f32 %v722, %v724
  %v726 = vadd.f32 %v722, %v725
  %vm727 = vweird.f32 %v721
  %vm728 = vweird.f32 %v722
  %vm729 = vmor %vm727, %vm728
  %v730 = vsel %vm729, %v722, %v726
  %v731 = vand.u32 2147483647, %v721
  %vm732 = vcmp.eq.f32.partialorder %v731, 8.507059e+37
  %v733 = vand.u32 %v721, 2147483648
  %v734 = vor.u32 1.1754944e-38, %v733
  %v735 = vsel %vm732, %v734, %v730
  %v736 = vmul.f32 1.0, %v735
  %738 = vset.pattern.permute.xlu0 0
  %739 = vperm.xlu0 %738, %v736
  %v740 = vpop.permute.xlu0 %739
  %742 = vst [vmem:[%s21] sm:$0xf] %v740
  // Predicated region
  $region86: #{hybrid_forward.1} parent=0 // pred_check
    _
  $region87: #{hybrid_forward.1} parent=0 // pred_check_branch
    %744 = sbr.rel (0) target = $region89
  $region88: #{hybrid_forward.1} parent=0 // pred_region
    _
  $region89: #{hybrid_forward.1} parent=0 // pred_fallthru
    _
  // Predicated region
  $region90: #{hybrid_forward.1} parent=0 // pred_check
    _
  $region91: #{hybrid_forward.1} parent=0 // pred_check_branch
    %746 = sbr.rel (0) target = $region93
  $region92: #{hybrid_forward.1} parent=0 // pred_region
    _
  $region93: #{hybrid_forward.1} parent=0 // pred_fallthru
    _

</llo_original>
